<compile_context>
chip_gen: v6e
topology: v6e:2x2x1
jax: 0.10.0
libtpu: 0.0.40
codegen_flags: <defaults>
</compile_context>

<pallas_src>
import jax
import jax.numpy as jnp
import numpy as np
from jax import lax
from jax.experimental import pallas as pl
from jax.experimental.pallas import tpu as pltpu


# ---------------------------------------------------------------------------
# Pallas kernels: lane-dense conv-as-matmul with fused bias + LeakyReLU.
# ---------------------------------------------------------------------------
def _matmul_bias_lrelu_kernel(w_ref, p_ref, b_ref, o_ref):
    # (Cout, K) @ (K, TM) -> f32 accumulate, + bias, LeakyReLU(0.01)
    acc = jnp.dot(w_ref[...], p_ref[...], preferred_element_type=jnp.float32)
    acc = acc + b_ref[...]                       # (Cout, 1) broadcast over lanes
    o_ref[...] = jnp.where(acc > 0, acc, 0.01 * acc)


def _matmul_kernel(w_ref, p_ref, o_ref):
    # (Cout, K) @ (K, TM) -> f32, no bias / activation (conv heads)
    o_ref[...] = jnp.dot(w_ref[...], p_ref[...], preferred_element_type=jnp.float32)


def _round_up(x, m):
    return ((x + m - 1) // m) * m


def _pallas_conv_matmul(w2d, patches_t, bias=None, lrelu=False):
    """Lane-dense conv matmul: (Cout, K) @ (K, M) -> (Cout, M) f32.

    The M axis (N*Hout*Wout) is padded to a multiple of the tile TM and tiled
    over a 1-D "parallel" grid; K and Cout stay as full (small) blocks.
    """
    cout, k = w2d.shape
    k2, m = patches_t.shape
    assert k == k2

    mp128 = _round_up(max(m, 1), 128)
    tm = min(512, mp128)

    # VMEM budget (keep double-buffered tiles comfortably under v7x limits).
    def _tile_bytes(t):
        return 2 * (k * t * 2) + 2 * (cout * t * 4) + cout * k * 2

    while tm > 128 and _tile_bytes(tm) > 24 * 1024 * 1024:
        tm //= 2
    mp = _round_up(m, tm)

    w_bf = w2d.astype(jnp.bfloat16)
    p_bf = patches_t.astype(jnp.bfloat16)
    if mp != m:
        p_bf = jnp.pad(p_bf, ((0, 0), (0, mp - m)))

    grid = (mp // tm,)
    cost = pl.CostEstimate(
        flops=2 * cout * k * mp,
        transcendentals=0,
        bytes_accessed=cout * k * 2 + k * mp * 2 + cout * mp * 4,
    )
    cparams = pltpu.CompilerParams(
        dimension_semantics=("parallel",),
        vmem_limit_bytes=int(min(max(4 * _tile_bytes(tm), 16 * 1024 * 1024),
                                 48 * 1024 * 1024)),
    )

    if lrelu:
        assert bias is not None
        out = pl.pallas_call(
            _matmul_bias_lrelu_kernel,
            out_shape=jax.ShapeDtypeStruct((cout, mp), jnp.float32),
            grid=grid,
            in_specs=[
                pl.BlockSpec((cout, k), lambda i: (0, 0)),   # weights (resident)
                pl.BlockSpec((k, tm), lambda i: (0, i)),     # patch tile over M
                pl.BlockSpec((cout, 1), lambda i: (0, 0)),   # bias
            ],
            out_specs=pl.BlockSpec((cout, tm), lambda i: (0, i)),
            compiler_params=cparams,
            cost_estimate=cost,
        )(w_bf, p_bf, bias.reshape(cout, 1).astype(jnp.float32))
    else:
        out = pl.pallas_call(
            _matmul_kernel,
            out_shape=jax.ShapeDtypeStruct((cout, mp), jnp.float32),
            grid=grid,
            in_specs=[
                pl.BlockSpec((cout, k), lambda i: (0, 0)),
                pl.BlockSpec((k, tm), lambda i: (0, i)),
            ],
            out_specs=pl.BlockSpec((cout, tm), lambda i: (0, i)),
            compiler_params=cparams,
            cost_estimate=cost,
        )(w_bf, p_bf)
    return out[:, :m]


# ---------------------------------------------------------------------------
# Plain-JAX glue: transpose-free im2col in CNHW layout.
# ---------------------------------------------------------------------------
def _im2col_t_cnhw(x_cnhw, kh, kw, stride, pad):
    """CNHW activation -> (K, M) patch matrix.

    K-order = (kh, kw, Cin), M-order = (N, Hout, Wout).
    Only pad + strided slices + concat: no transposes are emitted.
    """
    c, n, h, w = x_cnhw.shape
    xp = jnp.pad(x_cnhw, ((0, 0), (0, 0), (pad, pad), (pad, pad)))
    hout = (h + 2 * pad - kh) // stride + 1
    wout = (w + 2 * pad - kw) // stride + 1
    cols = []
    for i in range(kh):
        for j in range(kw):
            cols.append(
                xp[:, :, i:i + stride * hout:stride, j:j + stride * wout:stride])
    pats = jnp.concatenate(cols, axis=0)          # (kh*kw*C, N, Hout, Wout)
    return pats.reshape(kh * kw * c, n * hout * wout), hout, wout


def conv2d_pallas_cnhw(x_cnhw, w_oihw, bias=None, stride=1, pad=0, lrelu=False):
    cout, cin, kh, kw = w_oihw.shape
    c, n, _, _ = x_cnhw.shape
    assert c == cin
    patches_t, hout, wout = _im2col_t_cnhw(
        x_cnhw.astype(jnp.bfloat16), kh, kw, stride, pad)
    # Flatten OIHW weights to match the (kh, kw, Cin) K-ordering of patches.
    w2d = jnp.transpose(w_oihw, (0, 2, 3, 1)).reshape(cout, kh * kw * cin)
    out_t = _pallas_conv_matmul(w2d, patches_t, bias=bias, lrelu=lrelu)
    return out_t.reshape(cout, n, hout, wout)     # stays CNHW, no transpose


# ---------------------------------------------------------------------------
# Discriminator: parameter init + forward (NCHW / (B, C) external API).
# ---------------------------------------------------------------------------
def init_discriminator_params(key, image_size=16, conv_dim=8, c_dim=4, r_dim=2,
                              repeat_num=3):
    keys = jax.random.split(key, 2 * repeat_num + 3)
    main = []
    cin, cout = 3, conv_dim
    for i in range(repeat_num):
        w = 0.05 * jax.random.normal(keys[2 * i], (cout, cin, 4, 4), jnp.float32)
        b = 0.05 * jax.random.normal(keys[2 * i + 1], (cout,), jnp.float32)
        main.append((w, b))
        cin, cout = cout, cout * 2
    curr_dim = cin
    ksz = image_size // (2 ** repeat_num)
    conv1_w = 0.05 * jax.random.normal(keys[-3], (1, curr_dim, 3, 3), jnp.float32)
    conv2_w = 0.05 * jax.random.normal(keys[-2], (c_dim, curr_dim, ksz, ksz), jnp.float32)
    conv3_w = 0.05 * jax.random.normal(keys[-1], (r_dim, curr_dim, ksz, ksz), jnp.float32)
    return dict(main=main, conv1_w=conv1_w, conv2_w=conv2_w, conv3_w=conv3_w)


def discriminator_forward(x_nchw, params):
    n = x_nchw.shape[0]
    h = jnp.transpose(x_nchw, (1, 0, 2, 3))        # NCHW -> CNHW (once)
    for (w, b) in params["main"]:
        h = conv2d_pallas_cnhw(h, w, bias=b, stride=2, pad=1, lrelu=True)

    out_src = conv2d_pallas_cnhw(h, params["conv1_w"], stride=1, pad=1)
    out_src = jnp.transpose(out_src, (1, 0, 2, 3))  # back to NCHW

    # conv2 + conv3 consume the identical full-spatial im2col -> one matmul.
    c_dim = params["conv2_w"].shape[0]
    w_heads = jnp.concatenate([params["conv2_w"], params["conv3_w"]], axis=0)
    out_heads = conv2d_pallas_cnhw(h, w_heads, stride=1, pad=0)  # (c+r, N, 1, 1)
    out_heads = out_heads.reshape(-1, n)
    out_cls = out_heads[:c_dim].T                  # (N, c_dim)
    out_reg = out_heads[c_dim:].T                  # (N, r_dim)
    return out_src, out_cls, out_reg


# ---------------------------------------------------------------------------
# Pure-JAX reference (f32 lax conv, NCHW) for a correctness check.
# ---------------------------------------------------------------------------
def _ref_conv(x, w, b=None, stride=1, pad=0, lrelu=False):
    out = lax.conv_general_dilated(
        x, w, window_strides=(stride, stride),
        padding=[(pad, pad), (pad, pad)],
        dimension_numbers=("NCHW", "OIHW", "NCHW"),
    )
    if b is not None:
        out = out + b.reshape(1, -1, 1, 1)
    if lrelu:
        out = jnp.where(out > 0, out, 0.01 * out)
    return out


def _ref_forward(x, params):
    h = x
    for (w, b) in params["main"]:
        h = _ref_conv(h, w, b, stride=2, pad=1, lrelu=True)
    out_src = _ref_conv(h, params["conv1_w"], stride=1, pad=1)
    out_cls = _ref_conv(h, params["conv2_w"], stride=1, pad=0)
    out_reg = _ref_conv(h, params["conv3_w"], stride=1, pad=0)
    b = x.shape[0]
    return out_src, out_cls.reshape(b, -1), out_reg.reshape(b, -1)


if __name__ == "__main__":
    # Small config consistent with the module:
    # image_size=16, conv_dim=8, c_dim=4, r_dim=2, repeat_num=3
    #   -> head kernel_size = 16 / 2**3 = 2, curr_dim = 32
    key = jax.random.PRNGKey(0)
    k_x, k_p = jax.random.split(key)
    x = jax.random.normal(k_x, (2, 3, 16, 16), jnp.float32)  # NCHW, like PyTorch
    params = init_discriminator_params(k_p, image_size=16, conv_dim=8,
                                       c_dim=4, r_dim=2, repeat_num=3)

    fwd = jax.jit(discriminator_forward)
    out_src, out_cls, out_reg = fwd(x, params)
    jax.block_until_ready((out_src, out_cls, out_reg))

    # sanity: shapes match PyTorch semantics
    assert out_src.shape == (2, 1, 2, 2)
    assert out_cls.shape == (2, 4)
    assert out_reg.shape == (2, 2)

    # numerical check vs pure-JAX f32 reference conv (bf16 operands in the
    # Pallas path with f32 accumulation -> slightly loosened tolerance).
    r_src, r_cls, r_reg = _ref_forward(x, params)
    np.testing.assert_allclose(np.asarray(out_src), np.asarray(r_src), atol=3e-2, rtol=3e-2)
    np.testing.assert_allclose(np.asarray(out_cls), np.asarray(r_cls), atol=3e-2, rtol=3e-2)
    np.testing.assert_allclose(np.asarray(out_reg), np.asarray(r_reg), atol=3e-2, rtol=3e-2)

    print("KERNEL_OK")
</pallas_src>

<mosaic_0001>
module attributes {stable_mosaic.version = 11 : i64} {
  func.func @_matmul_bias_lrelu_kernel(%arg0: i32, %arg1: memref<8x48xbf16, #tpu.memory_space<vmem>>, %arg2: memref<48x128xbf16, #tpu.memory_space<vmem>>, %arg3: memref<8x1xf32, #tpu.memory_space<vmem>>, %arg4: memref<8x128xf32, #tpu.memory_space<vmem>>) attributes {dimension_semantics = [#tpu.dimension_semantics<parallel>], iteration_bounds = array<i64: 1>, scalar_prefetch = 0 : i64, scratch_operands = 0 : i64, tpu.core_type = #tpu.core_type<tc>, window_params = [{pipeline_mode = #tpu.pipeline_mode<synchronous>, transform_indices = @transform_0, window_bounds = array<i64: 8, 48>}, {transform_indices = @transform_1, window_bounds = array<i64: 48, 128>}, {pipeline_mode = #tpu.pipeline_mode<synchronous>, transform_indices = @transform_2, window_bounds = array<i64: 8, 1>}, {transform_indices = @transform_3, window_bounds = array<i64: 8, 128>}]} {
    %c0 = arith.constant 0 : index
    %c0_0 = arith.constant 0 : index
    %0 = vector.load %arg1[%c0, %c0_0] : memref<8x48xbf16, #tpu.memory_space<vmem>>, vector<8x48xbf16>
    %c0_1 = arith.constant 0 : index
    %c0_2 = arith.constant 0 : index
    %1 = vector.load %arg2[%c0_1, %c0_2] : memref<48x128xbf16, #tpu.memory_space<vmem>>, vector<48x128xbf16>
    %cst = arith.constant dense<0.000000e+00> : vector<8x128xf32>
    %2 = tpu.matmul %0, %1, %cst {dimension_numbers = #tpu.dot_dimension_numbers<[1], [0], [0], [1], [0, 0, 1, 1], [], []>} : vector<8x48xbf16>, vector<48x128xbf16>, vector<8x128xf32> -> vector<8x128xf32>
    %c0_3 = arith.constant 0 : index
    %c0_4 = arith.constant 0 : index
    %3 = vector.load %arg3[%c0_3, %c0_4] : memref<8x1xf32, #tpu.memory_space<vmem>>, vector<8x1xf32>
    %4 = vector.broadcast %3 : vector<8x1xf32> to vector<8x128xf32>
    %5 = arith.addf %2, %4 : vector<8x128xf32>
    %cst_5 = arith.constant 0.000000e+00 : f32
    %6 = vector.broadcast %cst_5 : f32 to vector<8x128xf32>
    %7 = arith.cmpf ogt, %5, %6 : vector<8x128xf32>
    %cst_6 = arith.constant 0.00999999977 : f32
    %8 = vector.broadcast %cst_6 : f32 to vector<8x128xf32>
    %9 = arith.mulf %8, %5 : vector<8x128xf32>
    %10 = arith.select %7, %5, %9 : vector<8x128xi1>, vector<8x128xf32>
    %c0_7 = arith.constant 0 : index
    %c0_8 = arith.constant 0 : index
    %11 = vector.load %arg4[%c0_7, %c0_8] : memref<8x128xf32, #tpu.memory_space<vmem>>, vector<8x128xf32>
    tpu.vector_store %arg4[%c0_7, %c0_8], %10 {strides = array<i32>} : memref<8x128xf32, #tpu.memory_space<vmem>>, vector<8x128xf32>,
    return
  }
  func.func @transform_0(%arg0: i32) -> (i32, i32) {
    %c0_i32 = arith.constant 0 : i32
    %c0_i32_0 = arith.constant 0 : i32
    %c0_i32_1 = arith.constant 0 : i32
    return %c0_i32, %c0_i32_0 : i32, i32
  }
  func.func @transform_1(%arg0: i32) -> (i32, i32) {
    %c0_i32 = arith.constant 0 : i32
    %c0_i32_0 = arith.constant 0 : i32
    return %c0_i32, %arg0 : i32, i32
  }
  func.func @transform_2(%arg0: i32) -> (i32, i32) {
    %c0_i32 = arith.constant 0 : i32
    %c0_i32_0 = arith.constant 0 : i32
    %c0_i32_1 = arith.constant 0 : i32
    return %c0_i32, %c0_i32_0 : i32, i32
  }
  func.func @transform_3(%arg0: i32) -> (i32, i32) {
    %c0_i32 = arith.constant 0 : i32
    %c0_i32_0 = arith.constant 0 : i32
    return %c0_i32, %arg0 : i32, i32
  }
}

module attributes {stable_mosaic.version = 11 : i64} {
  func.func @_matmul_bias_lrelu_kernel(%arg0: i32, %arg1: memref<16x128xbf16, #tpu.memory_space<vmem>>, %arg2: memref<128x128xbf16, #tpu.memory_space<vmem>>, %arg3: memref<16x1xf32, #tpu.memory_space<vmem>>, %arg4: memref<16x128xf32, #tpu.memory_space<vmem>>) attributes {dimension_semantics = [#tpu.dimension_semantics<parallel>], iteration_bounds = array<i64: 1>, scalar_prefetch = 0 : i64, scratch_operands = 0 : i64, tpu.core_type = #tpu.core_type<tc>, window_params = [{pipeline_mode = #tpu.pipeline_mode<synchronous>, transform_indices = @transform_0, window_bounds = array<i64: 16, 128>}, {transform_indices = @transform_1, window_bounds = array<i64: 128, 128>}, {pipeline_mode = #tpu.pipeline_mode<synchronous>, transform_indices = @transform_2, window_bounds = array<i64: 16, 1>}, {transform_indices = @transform_3, window_bounds = array<i64: 16, 128>}]} {
    %c0 = arith.constant 0 : index
    %c0_0 = arith.constant 0 : index
    %0 = vector.load %arg1[%c0, %c0_0] : memref<16x128xbf16, #tpu.memory_space<vmem>>, vector<16x128xbf16>
    %c0_1 = arith.constant 0 : index
    %c0_2 = arith.constant 0 : index
    %1 = vector.load %arg2[%c0_1, %c0_2] : memref<128x128xbf16, #tpu.memory_space<vmem>>, vector<128x128xbf16>
    %cst = arith.constant dense<0.000000e+00> : vector<16x128xf32>
    %2 = tpu.matmul %0, %1, %cst {dimension_numbers = #tpu.dot_dimension_numbers<[1], [0], [0], [1], [0, 0, 1, 1], [], []>} : vector<16x128xbf16>, vector<128x128xbf16>, vector<16x128xf32> -> vector<16x128xf32>
    %c0_3 = arith.constant 0 : index
    %c0_4 = arith.constant 0 : index
    %3 = vector.load %arg3[%c0_3, %c0_4] : memref<16x1xf32, #tpu.memory_space<vmem>>, vector<16x1xf32>
    %4 = vector.broadcast %3 : vector<16x1xf32> to vector<16x128xf32>
    %5 = arith.addf %2, %4 : vector<16x128xf32>
    %cst_5 = arith.constant 0.000000e+00 : f32
    %6 = vector.broadcast %cst_5 : f32 to vector<16x128xf32>
    %7 = arith.cmpf ogt, %5, %6 : vector<16x128xf32>
    %cst_6 = arith.constant 0.00999999977 : f32
    %8 = vector.broadcast %cst_6 : f32 to vector<16x128xf32>
    %9 = arith.mulf %8, %5 : vector<16x128xf32>
    %10 = arith.select %7, %5, %9 : vector<16x128xi1>, vector<16x128xf32>
    %c0_7 = arith.constant 0 : index
    %c0_8 = arith.constant 0 : index
    %11 = vector.load %arg4[%c0_7, %c0_8] : memref<16x128xf32, #tpu.memory_space<vmem>>, vector<16x128xf32>
    tpu.vector_store %arg4[%c0_7, %c0_8], %10 {strides = array<i32>} : memref<16x128xf32, #tpu.memory_space<vmem>>, vector<16x128xf32>,
    return
  }
  func.func @transform_0(%arg0: i32) -> (i32, i32) {
    %c0_i32 = arith.constant 0 : i32
    %c0_i32_0 = arith.constant 0 : i32
    %c0_i32_1 = arith.constant 0 : i32
    return %c0_i32, %c0_i32_0 : i32, i32
  }
  func.func @transform_1(%arg0: i32) -> (i32, i32) {
    %c0_i32 = arith.constant 0 : i32
    %c0_i32_0 = arith.constant 0 : i32
    return %c0_i32, %arg0 : i32, i32
  }
  func.func @transform_2(%arg0: i32) -> (i32, i32) {
    %c0_i32 = arith.constant 0 : i32
    %c0_i32_0 = arith.constant 0 : i32
    %c0_i32_1 = arith.constant 0 : i32
    return %c0_i32, %c0_i32_0 : i32, i32
  }
  func.func @transform_3(%arg0: i32) -> (i32, i32) {
    %c0_i32 = arith.constant 0 : i32
    %c0_i32_0 = arith.constant 0 : i32
    return %c0_i32, %arg0 : i32, i32
  }
}

module attributes {stable_mosaic.version = 11 : i64} {
  func.func @_matmul_bias_lrelu_kernel(%arg0: i32, %arg1: memref<32x256xbf16, #tpu.memory_space<vmem>>, %arg2: memref<256x128xbf16, #tpu.memory_space<vmem>>, %arg3: memref<32x1xf32, #tpu.memory_space<vmem>>, %arg4: memref<32x128xf32, #tpu.memory_space<vmem>>) attributes {dimension_semantics = [#tpu.dimension_semantics<parallel>], iteration_bounds = array<i64: 1>, scalar_prefetch = 0 : i64, scratch_operands = 0 : i64, tpu.core_type = #tpu.core_type<tc>, window_params = [{pipeline_mode = #tpu.pipeline_mode<synchronous>, transform_indices = @transform_0, window_bounds = array<i64: 32, 256>}, {transform_indices = @transform_1, window_bounds = array<i64: 256, 128>}, {pipeline_mode = #tpu.pipeline_mode<synchronous>, transform_indices = @transform_2, window_bounds = array<i64: 32, 1>}, {transform_indices = @transform_3, window_bounds = array<i64: 32, 128>}]} {
    %c0 = arith.constant 0 : index
    %c0_0 = arith.constant 0 : index
    %0 = vector.load %arg1[%c0, %c0_0] : memref<32x256xbf16, #tpu.memory_space<vmem>>, vector<32x256xbf16>
    %c0_1 = arith.constant 0 : index
    %c0_2 = arith.constant 0 : index
    %1 = vector.load %arg2[%c0_1, %c0_2] : memref<256x128xbf16, #tpu.memory_space<vmem>>, vector<256x128xbf16>
    %cst = arith.constant dense<0.000000e+00> : vector<32x128xf32>
    %2 = tpu.matmul %0, %1, %cst {dimension_numbers = #tpu.dot_dimension_numbers<[1], [0], [0], [1], [0, 0, 1, 1], [], []>} : vector<32x256xbf16>, vector<256x128xbf16>, vector<32x128xf32> -> vector<32x128xf32>
    %c0_3 = arith.constant 0 : index
    %c0_4 = arith.constant 0 : index
    %3 = vector.load %arg3[%c0_3, %c0_4] : memref<32x1xf32, #tpu.memory_space<vmem>>, vector<32x1xf32>
    %4 = vector.broadcast %3 : vector<32x1xf32> to vector<32x128xf32>
    %5 = arith.addf %2, %4 : vector<32x128xf32>
    %cst_5 = arith.constant 0.000000e+00 : f32
    %6 = vector.broadcast %cst_5 : f32 to vector<32x128xf32>
    %7 = arith.cmpf ogt, %5, %6 : vector<32x128xf32>
    %cst_6 = arith.constant 0.00999999977 : f32
    %8 = vector.broadcast %cst_6 : f32 to vector<32x128xf32>
    %9 = arith.mulf %8, %5 : vector<32x128xf32>
    %10 = arith.select %7, %5, %9 : vector<32x128xi1>, vector<32x128xf32>
    %c0_7 = arith.constant 0 : index
    %c0_8 = arith.constant 0 : index
    %11 = vector.load %arg4[%c0_7, %c0_8] : memref<32x128xf32, #tpu.memory_space<vmem>>, vector<32x128xf32>
    tpu.vector_store %arg4[%c0_7, %c0_8], %10 {strides = array<i32>} : memref<32x128xf32, #tpu.memory_space<vmem>>, vector<32x128xf32>,
    return
  }
  func.func @transform_0(%arg0: i32) -> (i32, i32) {
    %c0_i32 = arith.constant 0 : i32
    %c0_i32_0 = arith.constant 0 : i32
    %c0_i32_1 = arith.constant 0 : i32
    return %c0_i32, %c0_i32_0 : i32, i32
  }
  func.func @transform_1(%arg0: i32) -> (i32, i32) {
    %c0_i32 = arith.constant 0 : i32
    %c0_i32_0 = arith.constant 0 : i32
    return %c0_i32, %arg0 : i32, i32
  }
  func.func @transform_2(%arg0: i32) -> (i32, i32) {
    %c0_i32 = arith.constant 0 : i32
    %c0_i32_0 = arith.constant 0 : i32
    %c0_i32_1 = arith.constant 0 : i32
    return %c0_i32, %c0_i32_0 : i32, i32
  }
  func.func @transform_3(%arg0: i32) -> (i32, i32) {
    %c0_i32 = arith.constant 0 : i32
    %c0_i32_0 = arith.constant 0 : i32
    return %c0_i32, %arg0 : i32, i32
  }
}

module attributes {stable_mosaic.version = 11 : i64} {
  func.func @_matmul_kernel(%arg0: i32, %arg1: memref<6x128xbf16, #tpu.memory_space<vmem>>, %arg2: memref<128x128xbf16, #tpu.memory_space<vmem>>, %arg3: memref<6x128xf32, #tpu.memory_space<vmem>>) attributes {dimension_semantics = [#tpu.dimension_semantics<parallel>], iteration_bounds = array<i64: 1>, scalar_prefetch = 0 : i64, scratch_operands = 0 : i64, tpu.core_type = #tpu.core_type<tc>, window_params = [{pipeline_mode = #tpu.pipeline_mode<synchronous>, transform_indices = @transform_0, window_bounds = array<i64: 6, 128>}, {transform_indices = @transform_1, window_bounds = array<i64: 128, 128>}, {transform_indices = @transform_2, window_bounds = array<i64: 6, 128>}]} {
    %c0 = arith.constant 0 : index
    %c0_0 = arith.constant 0 : index
    %0 = vector.load %arg1[%c0, %c0_0] : memref<6x128xbf16, #tpu.memory_space<vmem>>, vector<6x128xbf16>
    %c0_1 = arith.constant 0 : index
    %c0_2 = arith.constant 0 : index
    %1 = vector.load %arg2[%c0_1, %c0_2] : memref<128x128xbf16, #tpu.memory_space<vmem>>, vector<128x128xbf16>
    %cst = arith.constant dense<0.000000e+00> : vector<6x128xf32>
    %2 = tpu.matmul %0, %1, %cst {dimension_numbers = #tpu.dot_dimension_numbers<[1], [0], [0], [1], [0, 0, 1, 1], [], []>} : vector<6x128xbf16>, vector<128x128xbf16>, vector<6x128xf32> -> vector<6x128xf32>
    %c0_3 = arith.constant 0 : index
    %c0_4 = arith.constant 0 : index
    %3 = vector.load %arg3[%c0_3, %c0_4] : memref<6x128xf32, #tpu.memory_space<vmem>>, vector<6x128xf32>
    tpu.vector_store %arg3[%c0_3, %c0_4], %2 {strides = array<i32>} : memref<6x128xf32, #tpu.memory_space<vmem>>, vector<6x128xf32>,
    return
  }
  func.func @transform_0(%arg0: i32) -> (i32, i32) {
    %c0_i32 = arith.constant 0 : i32
    %c0_i32_0 = arith.constant 0 : i32
    %c0_i32_1 = arith.constant 0 : i32
    return %c0_i32, %c0_i32_0 : i32, i32
  }
  func.func @transform_1(%arg0: i32) -> (i32, i32) {
    %c0_i32 = arith.constant 0 : i32
    %c0_i32_0 = arith.constant 0 : i32
    return %c0_i32, %arg0 : i32, i32
  }
  func.func @transform_2(%arg0: i32) -> (i32, i32) {
    %c0_i32 = arith.constant 0 : i32
    %c0_i32_0 = arith.constant 0 : i32
    return %c0_i32, %arg0 : i32, i32
  }
}

module attributes {stable_mosaic.version = 11 : i64} {
  func.func @_matmul_kernel(%arg0: i32, %arg1: memref<1x288xbf16, #tpu.memory_space<vmem>>, %arg2: memref<288x128xbf16, #tpu.memory_space<vmem>>, %arg3: memref<1x128xf32, #tpu.memory_space<vmem>>) attributes {dimension_semantics = [#tpu.dimension_semantics<parallel>], iteration_bounds = array<i64: 1>, scalar_prefetch = 0 : i64, scratch_operands = 0 : i64, tpu.core_type = #tpu.core_type<tc>, window_params = [{pipeline_mode = #tpu.pipeline_mode<synchronous>, transform_indices = @transform_0, window_bounds = array<i64: 1, 288>}, {transform_indices = @transform_1, window_bounds = array<i64: 288, 128>}, {transform_indices = @transform_2, window_bounds = array<i64: 1, 128>}]} {
    %c0 = arith.constant 0 : index
    %c0_0 = arith.constant 0 : index
    %0 = vector.load %arg1[%c0, %c0_0] : memref<1x288xbf16, #tpu.memory_space<vmem>>, vector<1x288xbf16>
    %c0_1 = arith.constant 0 : index
    %c0_2 = arith.constant 0 : index
    %1 = vector.load %arg2[%c0_1, %c0_2] : memref<288x128xbf16, #tpu.memory_space<vmem>>, vector<288x128xbf16>
    %cst = arith.constant dense<0.000000e+00> : vector<1x128xf32>
    %2 = tpu.matmul %0, %1, %cst {dimension_numbers = #tpu.dot_dimension_numbers<[1], [0], [0], [1], [0, 0, 1, 1], [], []>} : vector<1x288xbf16>, vector<288x128xbf16>, vector<1x128xf32> -> vector<1x128xf32>
    %c0_3 = arith.constant 0 : index
    %c0_4 = arith.constant 0 : index
    %3 = vector.load %arg3[%c0_3, %c0_4] : memref<1x128xf32, #tpu.memory_space<vmem>>, vector<1x128xf32>
    tpu.vector_store %arg3[%c0_3, %c0_4], %2 {strides = array<i32>} : memref<1x128xf32, #tpu.memory_space<vmem>>, vector<1x128xf32>,
    return
  }
  func.func @transform_0(%arg0: i32) -> (i32, i32) {
    %c0_i32 = arith.constant 0 : i32
    %c0_i32_0 = arith.constant 0 : i32
    %c0_i32_1 = arith.constant 0 : i32
    return %c0_i32, %c0_i32_0 : i32, i32
  }
  func.func @transform_1(%arg0: i32) -> (i32, i32) {
    %c0_i32 = arith.constant 0 : i32
    %c0_i32_0 = arith.constant 0 : i32
    return %c0_i32, %arg0 : i32, i32
  }
  func.func @transform_2(%arg0: i32) -> (i32, i32) {
    %c0_i32 = arith.constant 0 : i32
    %c0_i32_0 = arith.constant 0 : i32
    return %c0_i32, %arg0 : i32, i32
  }
}

</mosaic_0001>

<llo_original>
// kernel: discriminator_forward.5
$region0: #{discriminator_forward.5}
  #allocation0 [shape = 'u32[]', space=smem, size = 0x4, offset = 0x4, fixed_abs, tag = 'smem constant byte address 0x4 - core index']
  #allocation1 [shape = 'u32[144,128]{1,0:T(1,128)}', space=vmem, size = 0x12000, scoped, tag = 'internal scratch']
  %s0 = inlined_call_operand.vmem [shape: bf16[8,48], index: 0, kind: input, shape index: {}]
  %s1 = inlined_call_operand.vmem [shape: bf16[48,128], index: 1, kind: input, shape index: {}]
  %s2 = inlined_call_operand.vmem [shape: f32[8,1], index: 2, kind: input, shape index: {}]
  %s3 = inlined_call_operand.vmem [shape: f32[8,128], index: 3, kind: output, shape index: {}]
  %s4 = sld [smem:[#allocation0]]
  $region22: #{discriminator_forward.5} parent=0
    _
  %s6 = ssub.s32 1, %s4
  %s7 = scalar_select 0, %s6, %s4
  // Predicated region
  $region2: #{discriminator_forward.5} parent=0 // pred_check
    _
  $region3: #{discriminator_forward.5} parent=0 // pred_check_branch
    %9 = sbr.rel (0) target = $region5
  $region4: #{discriminator_forward.5} parent=0 // pred_region
    _
  $region5: #{discriminator_forward.5} parent=0 // pred_fallthru
    _
  // Predicated region
  $region6: #{discriminator_forward.5} parent=0 // pred_check
    _
  $region7: #{discriminator_forward.5} parent=0 // pred_check_branch
    %11 = sbr.rel (0) target = $region9
  $region8: #{discriminator_forward.5} parent=0 // pred_region
    _
  $region9: #{discriminator_forward.5} parent=0 // pred_fallthru
    _
  // Predicated region
  $region10: #{discriminator_forward.5} parent=0 // pred_check
    _
  $region11: #{discriminator_forward.5} parent=0 // pred_check_branch
    %13 = sbr.rel (0) target = $region13
  $region12: #{discriminator_forward.5} parent=0 // pred_region
    _
  $region13: #{discriminator_forward.5} parent=0 // pred_fallthru
    _
  %v15 = vld [vmem:[%s0] sm:$0xf]
  %v16 = vld [vmem:[%s1] sm:$0xf]
  %v17 = vld [vmem:[%s1 + $0x4] sm:$0xf]
  %v18 = vld [vmem:[%s1 + $0x8] sm:$0xf]
  %v19 = vld [vmem:[%s1 + $0xc] sm:$0xf]
  %v20 = vld [vmem:[%s1 + $0x10] sm:$0xf]
  %v21 = vld [vmem:[%s1 + $0x14] sm:$0xf]
  %v22 = vld [vmem:[%s2] sm:$0xff]
  %24 = vset.pattern.permute.xlu0 0
  %25 = vperm.xlu0 %24, %v22
  %v26 = vpop.permute.xlu0 %25
  %v34 = vunpack.c.l.b16 %v16
  %v35 = vunpack.c.l.b16 %v17
  %v36 = vunpack.c.l.b16 %v18
  %v37 = vunpack.c.l.b16 %v19
  %v38 = vunpack.c.l.b16 %v20
  %v39 = vunpack.c.l.b16 %v21
  %v40 = vpack.c.b16 %v35, %v34
  %v41 = vpack.c.b16 %v37, %v36
  %v42 = vpack.c.b16 %v39, %v38
  %vm46 = vcmask 392192
  %v48 = vsel %vm46, %v15, 0
  %50 = vmatprep.subr.bf16.mxu0 0
  %51 = vmatpush1.bf16.msra.mxu0 0
  %52 = vmatprep.subr.bf16.mxu0 0
  %53 = vmatpush1.bf16.msra.mxu0 0
  %54 = vmatprep.subr.bf16.mxu0 0
  %55 = vmatpush1.bf16.msra.mxu0 0
  %56 = vmatprep.subr.bf16.mxu0 0
  %57 = vmatpush1.bf16.msra.mxu0 0
  %58 = vmatprep.subr.bf16.mxu0 0
  %59 = vmatpush1.bf16.msra.mxu0 0
  %60 = vmatprep.subr.bf16.mxu0 0
  %61 = vmatpush1.bf16.msra.mxu0 %v42
  %62 = vmatprep.subr.bf16.mxu0 0
  %63 = vmatpush1.bf16.msra.mxu0 %v41
  %64 = vmatprep.subr.bf16.mxu0 0
  %65 = vmatpush1.bf16.msra.mxu0 %v40
  %66 = vmatprep.subr.bf16.mxu0 0
  %67 = vmatpush2.bf16.msra.mxu0 0
  %68 = vmatprep.subr.bf16.mxu0 0
  %69 = vmatpush2.bf16.msra.mxu0 0
  %70 = vmatprep.subr.bf16.mxu0 0
  %71 = vmatpush2.bf16.msra.mxu0 0
  %72 = vmatprep.subr.bf16.mxu0 0
  %73 = vmatpush2.bf16.msra.mxu0 0
  %74 = vmatprep.subr.bf16.mxu0 0
  %75 = vmatpush2.bf16.msra.mxu0 0
  %76 = vmatprep.subr.bf16.mxu0 0
  %77 = vmatpush2.bf16.msra.mxu0 0
  %78 = vmatprep.subr.bf16.mxu0 0
  %79 = vmatpush2.bf16.msra.mxu0 0
  %80 = vmatprep.subr.bf16.mxu0 0
  %81 = vmatpush2.bf16.msra.mxu0 0
  %82 = vmatprep.mubr.bf16.mxu0 0
  %83 = vmatmul.mubr.bf16.gmra.mxu0 %v48
  %v84 = vpop.f32.mrf.mxu0
  %v85 = vadd.f32 %v26, %v84
  %v86 = vpop.f32.mrf.mxu0
  %v87 = vpop.f32.mrf.mxu0
  %v88 = vpop.f32.mrf.mxu0
  %89 = vdwg.mxu0
  %vm90 = vcmp.gt.f32.partialorder %v85, 0.0
  %v91 = vmul.f32 %v85, 0.01
  %v92 = vsel %vm90, %v85, %v91
  %93 = vst [vmem:[%s3] sm:$0xff] %v92
  // Predicated region
  $region14: #{discriminator_forward.5} parent=0 // pred_check
    _
  $region15: #{discriminator_forward.5} parent=0 // pred_check_branch
    %95 = sbr.rel (0) target = $region17
  $region16: #{discriminator_forward.5} parent=0 // pred_region
    _
  $region17: #{discriminator_forward.5} parent=0 // pred_fallthru
    _
  // Predicated region
  $region18: #{discriminator_forward.5} parent=0 // pred_check
    _
  $region19: #{discriminator_forward.5} parent=0 // pred_check_branch
    %97 = sbr.rel (0) target = $region21
  $region20: #{discriminator_forward.5} parent=0 // pred_region
    _
  $region21: #{discriminator_forward.5} parent=0 // pred_fallthru
    _

// kernel: discriminator_forward.6
$region0: #{discriminator_forward.6}
  #allocation0 [shape = 'u32[]', space=smem, size = 0x4, offset = 0x4, fixed_abs, tag = 'smem constant byte address 0x4 - core index']
  #allocation1 [shape = 'u32[144,128]{1,0:T(1,128)}', space=vmem, size = 0x12000, scoped, tag = 'internal scratch']
  %s0 = inlined_call_operand.vmem [shape: bf16[16,128], index: 0, kind: input, shape index: {}]
  %s1 = inlined_call_operand.vmem [shape: bf16[128,128], index: 1, kind: input, shape index: {}]
  %s2 = inlined_call_operand.vmem [shape: f32[16,1], index: 2, kind: input, shape index: {}]
  %s3 = inlined_call_operand.vmem [shape: f32[16,128], index: 3, kind: output, shape index: {}]
  %s4 = sld [smem:[#allocation0]]
  $region22: #{discriminator_forward.6} parent=0
    _
  %s6 = ssub.s32 1, %s4
  %s7 = scalar_select 0, %s6, %s4
  // Predicated region
  $region2: #{discriminator_forward.6} parent=0 // pred_check
    _
  $region3: #{discriminator_forward.6} parent=0 // pred_check_branch
    %9 = sbr.rel (0) target = $region5
  $region4: #{discriminator_forward.6} parent=0 // pred_region
    _
  $region5: #{discriminator_forward.6} parent=0 // pred_fallthru
    _
  // Predicated region
  $region6: #{discriminator_forward.6} parent=0 // pred_check
    _
  $region7: #{discriminator_forward.6} parent=0 // pred_check_branch
    %11 = sbr.rel (0) target = $region9
  $region8: #{discriminator_forward.6} parent=0 // pred_region
    _
  $region9: #{discriminator_forward.6} parent=0 // pred_fallthru
    _
  // Predicated region
  $region10: #{discriminator_forward.6} parent=0 // pred_check
    _
  $region11: #{discriminator_forward.6} parent=0 // pred_check_branch
    %13 = sbr.rel (0) target = $region13
  $region12: #{discriminator_forward.6} parent=0 // pred_region
    _
  $region13: #{discriminator_forward.6} parent=0 // pred_fallthru
    _
  %v15 = vld [vmem:[%s0] sm:$0xf]
  %v16 = vld [vmem:[%s0 + $0x4] sm:$0xf]
  %v17 = vld [vmem:[%s1] sm:$0xf]
  %v18 = vld [vmem:[%s1 + $0x4] sm:$0xf]
  %v19 = vld [vmem:[%s1 + $0x8] sm:$0xf]
  %v20 = vld [vmem:[%s1 + $0xc] sm:$0xf]
  %v21 = vld [vmem:[%s1 + $0x10] sm:$0xf]
  %v22 = vld [vmem:[%s1 + $0x14] sm:$0xf]
  %v23 = vld [vmem:[%s1 + $0x18] sm:$0xf]
  %v24 = vld [vmem:[%s1 + $0x1c] sm:$0xf]
  %v25 = vld [vmem:[%s1 + $0x20] sm:$0xf]
  %v26 = vld [vmem:[%s1 + $0x24] sm:$0xf]
  %v27 = vld [vmem:[%s1 + $0x28] sm:$0xf]
  %v28 = vld [vmem:[%s1 + $0x2c] sm:$0xf]
  %v29 = vld [vmem:[%s1 + $0x30] sm:$0xf]
  %v30 = vld [vmem:[%s1 + $0x34] sm:$0xf]
  %v31 = vld [vmem:[%s1 + $0x38] sm:$0xf]
  %v32 = vld [vmem:[%s1 + $0x3c] sm:$0xf]
  %v33 = vld [vmem:[%s2] sm:$0xff]
  %v34 = vld [vmem:[%s2 + $0x8] sm:$0xff]
  %36 = vset.pattern.permute.xlu0 0
  %37 = vperm.xlu0 %36, %v33
  %v38 = vpop.permute.xlu0 %37
  %41 = vset.pattern.permute.xlu0 0
  %42 = vperm.xlu0 %41, %v34
  %v43 = vpop.permute.xlu0 %42
  %v47 = vunpack.c.l.b16 %v15
  %v48 = vunpack.c.l.b16 %v16
  %v49 = vpack.c.b16 %v48, %v47
  %v67 = vunpack.c.l.b16 %v17
  %v68 = vunpack.c.l.b16 %v18
  %v69 = vunpack.c.l.b16 %v19
  %v70 = vunpack.c.l.b16 %v20
  %v71 = vunpack.c.l.b16 %v21
  %v72 = vunpack.c.l.b16 %v22
  %v73 = vunpack.c.l.b16 %v23
  %v74 = vunpack.c.l.b16 %v24
  %v75 = vunpack.c.l.b16 %v25
  %v76 = vunpack.c.l.b16 %v26
  %v77 = vunpack.c.l.b16 %v27
  %v78 = vunpack.c.l.b16 %v28
  %v79 = vunpack.c.l.b16 %v29
  %v80 = vunpack.c.l.b16 %v30
  %v81 = vunpack.c.l.b16 %v31
  %v82 = vunpack.c.l.b16 %v32
  %v83 = vpack.c.b16 %v68, %v67
  %v84 = vpack.c.b16 %v70, %v69
  %v85 = vpack.c.b16 %v72, %v71
  %v86 = vpack.c.b16 %v74, %v73
  %v87 = vpack.c.b16 %v76, %v75
  %v88 = vpack.c.b16 %v78, %v77
  %v89 = vpack.c.b16 %v80, %v79
  %v90 = vpack.c.b16 %v82, %v81
  %99 = vmatprep.subr.bf16.mxu0 0
  %100 = vmatpush1.bf16.msra.mxu0 %v90
  %101 = vmatprep.subr.bf16.mxu0 0
  %102 = vmatpush1.bf16.msra.mxu0 %v89
  %103 = vmatprep.subr.bf16.mxu0 0
  %104 = vmatpush1.bf16.msra.mxu0 %v88
  %105 = vmatprep.subr.bf16.mxu0 0
  %106 = vmatpush1.bf16.msra.mxu0 %v87
  %107 = vmatprep.subr.bf16.mxu0 0
  %108 = vmatpush1.bf16.msra.mxu0 %v86
  %109 = vmatprep.subr.bf16.mxu0 0
  %110 = vmatpush1.bf16.msra.mxu0 %v85
  %111 = vmatprep.subr.bf16.mxu0 0
  %112 = vmatpush1.bf16.msra.mxu0 %v84
  %113 = vmatprep.subr.bf16.mxu0 0
  %114 = vmatpush1.bf16.msra.mxu0 %v83
  %115 = vmatprep.subr.bf16.mxu0 0
  %116 = vmatpush2.bf16.msra.mxu0 0
  %117 = vmatprep.subr.bf16.mxu0 0
  %118 = vmatpush2.bf16.msra.mxu0 0
  %119 = vmatprep.subr.bf16.mxu0 0
  %120 = vmatpush2.bf16.msra.mxu0 0
  %121 = vmatprep.subr.bf16.mxu0 0
  %122 = vmatpush2.bf16.msra.mxu0 0
  %123 = vmatprep.subr.bf16.mxu0 0
  %124 = vmatpush2.bf16.msra.mxu0 0
  %125 = vmatprep.subr.bf16.mxu0 0
  %126 = vmatpush2.bf16.msra.mxu0 0
  %127 = vmatprep.subr.bf16.mxu0 0
  %128 = vmatpush2.bf16.msra.mxu0 0
  %129 = vmatprep.subr.bf16.mxu0 0
  %130 = vmatpush2.bf16.msra.mxu0 0
  %131 = vmatprep.mubr.bf16.mxu0 0
  %132 = vmatmul.mubr.bf16.gmra.mxu0 %v49
  %v133 = vpop.f32.mrf.mxu0
  %v134 = vadd.f32 %v38, %v133
  %v135 = vpop.f32.mrf.mxu0
  %v136 = vpop.f32.mrf.mxu0
  %v137 = vadd.f32 %v43, %v136
  %v138 = vpop.f32.mrf.mxu0
  %139 = vdwg.mxu0
  %vm140 = vcmp.gt.f32.partialorder %v134, 0.0
  %vm141 = vcmp.gt.f32.partialorder %v137, 0.0
  %v142 = vmul.f32 %v134, 0.01
  %v143 = vmul.f32 %v137, 0.01
  %v144 = vsel %vm140, %v134, %v142
  %v145 = vsel %vm141, %v137, %v143
  %146 = vst [vmem:[%s3] sm:$0xff] %v144
  %147 = vst [vmem:[%s3 + $0x8] sm:$0xff] %v145
  // Predicated region
  $region14: #{discriminator_forward.6} parent=0 // pred_check
    _
  $region15: #{discriminator_forward.6} parent=0 // pred_check_branch
    %149 = sbr.rel (0) target = $region17
  $region16: #{discriminator_forward.6} parent=0 // pred_region
    _
  $region17: #{discriminator_forward.6} parent=0 // pred_fallthru
    _
  // Predicated region
  $region18: #{discriminator_forward.6} parent=0 // pred_check
    _
  $region19: #{discriminator_forward.6} parent=0 // pred_check_branch
    %151 = sbr.rel (0) target = $region21
  $region20: #{discriminator_forward.6} parent=0 // pred_region
    _
  $region21: #{discriminator_forward.6} parent=0 // pred_fallthru
    _

// kernel: discriminator_forward.9
$region0: #{discriminator_forward.9}
  #allocation0 [shape = 'u32[]', space=smem, size = 0x4, offset = 0x4, fixed_abs, tag = 'smem constant byte address 0x4 - core index']
  #allocation1 [shape = 'u32[144,128]{1,0:T(1,128)}', space=vmem, size = 0x12000, scoped, tag = 'internal scratch']
  %s0 = inlined_call_operand.vmem [shape: bf16[6,128], index: 0, kind: input, shape index: {}]
  %s1 = inlined_call_operand.vmem [shape: bf16[128,128], index: 1, kind: input, shape index: {}]
  %s2 = inlined_call_operand.vmem [shape: f32[6,128], index: 2, kind: output, shape index: {}]
  %s3 = sld [smem:[#allocation0]]
  $region18: #{discriminator_forward.9} parent=0
    _
  %s5 = ssub.s32 1, %s3
  %s6 = scalar_select 0, %s5, %s3
  // Predicated region
  $region2: #{discriminator_forward.9} parent=0 // pred_check
    _
  $region3: #{discriminator_forward.9} parent=0 // pred_check_branch
    %8 = sbr.rel (0) target = $region5
  $region4: #{discriminator_forward.9} parent=0 // pred_region
    _
  $region5: #{discriminator_forward.9} parent=0 // pred_fallthru
    _
  // Predicated region
  $region6: #{discriminator_forward.9} parent=0 // pred_check
    _
  $region7: #{discriminator_forward.9} parent=0 // pred_check_branch
    %10 = sbr.rel (0) target = $region9
  $region8: #{discriminator_forward.9} parent=0 // pred_region
    _
  $region9: #{discriminator_forward.9} parent=0 // pred_fallthru
    _
  %v12 = vld [vmem:[%s0] sm:$0x7]
  %v13 = vld [vmem:[%s1] sm:$0xf]
  %v14 = vld [vmem:[%s1 + $0x4] sm:$0xf]
  %v15 = vld [vmem:[%s1 + $0x8] sm:$0xf]
  %v16 = vld [vmem:[%s1 + $0xc] sm:$0xf]
  %v17 = vld [vmem:[%s1 + $0x10] sm:$0xf]
  %v18 = vld [vmem:[%s1 + $0x14] sm:$0xf]
  %v19 = vld [vmem:[%s1 + $0x18] sm:$0xf]
  %v20 = vld [vmem:[%s1 + $0x1c] sm:$0xf]
  %v21 = vld [vmem:[%s1 + $0x20] sm:$0xf]
  %v22 = vld [vmem:[%s1 + $0x24] sm:$0xf]
  %v23 = vld [vmem:[%s1 + $0x28] sm:$0xf]
  %v24 = vld [vmem:[%s1 + $0x2c] sm:$0xf]
  %v25 = vld [vmem:[%s1 + $0x30] sm:$0xf]
  %v26 = vld [vmem:[%s1 + $0x34] sm:$0xf]
  %v27 = vld [vmem:[%s1 + $0x38] sm:$0xf]
  %v28 = vld [vmem:[%s1 + $0x3c] sm:$0xf]
  %v45 = vunpack.c.l.b16 %v13
  %v46 = vunpack.c.l.b16 %v14
  %v47 = vunpack.c.l.b16 %v15
  %v48 = vunpack.c.l.b16 %v16
  %v49 = vunpack.c.l.b16 %v17
  %v50 = vunpack.c.l.b16 %v18
  %v51 = vunpack.c.l.b16 %v19
  %v52 = vunpack.c.l.b16 %v20
  %v53 = vunpack.c.l.b16 %v21
  %v54 = vunpack.c.l.b16 %v22
  %v55 = vunpack.c.l.b16 %v23
  %v56 = vunpack.c.l.b16 %v24
  %v57 = vunpack.c.l.b16 %v25
  %v58 = vunpack.c.l.b16 %v26
  %v59 = vunpack.c.l.b16 %v27
  %v60 = vunpack.c.l.b16 %v28
  %v61 = vpack.c.b16 %v46, %v45
  %v62 = vpack.c.b16 %v48, %v47
  %v63 = vpack.c.b16 %v50, %v49
  %v64 = vpack.c.b16 %v52, %v51
  %v65 = vpack.c.b16 %v54, %v53
  %v66 = vpack.c.b16 %v56, %v55
  %v67 = vpack.c.b16 %v58, %v57
  %v68 = vpack.c.b16 %v60, %v59
  %77 = vmatprep.subr.bf16.mxu0 0
  %78 = vmatpush1.bf16.msra.mxu0 %v68
  %79 = vmatprep.subr.bf16.mxu0 0
  %80 = vmatpush1.bf16.msra.mxu0 %v67
  %81 = vmatprep.subr.bf16.mxu0 0
  %82 = vmatpush1.bf16.msra.mxu0 %v66
  %83 = vmatprep.subr.bf16.mxu0 0
  %84 = vmatpush1.bf16.msra.mxu0 %v65
  %85 = vmatprep.subr.bf16.mxu0 0
  %86 = vmatpush1.bf16.msra.mxu0 %v64
  %87 = vmatprep.subr.bf16.mxu0 0
  %88 = vmatpush1.bf16.msra.mxu0 %v63
  %89 = vmatprep.subr.bf16.mxu0 0
  %90 = vmatpush1.bf16.msra.mxu0 %v62
  %91 = vmatprep.subr.bf16.mxu0 0
  %92 = vmatpush1.bf16.msra.mxu0 %v61
  %93 = vmatprep.subr.bf16.mxu0 0
  %94 = vmatpush2.bf16.msra.mxu0 0
  %95 = vmatprep.subr.bf16.mxu0 0
  %96 = vmatpush2.bf16.msra.mxu0 0
  %97 = vmatprep.subr.bf16.mxu0 0
  %98 = vmatpush2.bf16.msra.mxu0 0
  %99 = vmatprep.subr.bf16.mxu0 0
  %100 = vmatpush2.bf16.msra.mxu0 0
  %101 = vmatprep.subr.bf16.mxu0 0
  %102 = vmatpush2.bf16.msra.mxu0 0
  %103 = vmatprep.subr.bf16.mxu0 0
  %104 = vmatpush2.bf16.msra.mxu0 0
  %105 = vmatprep.subr.bf16.mxu0 0
  %106 = vmatpush2.bf16.msra.mxu0 0
  %107 = vmatprep.subr.bf16.mxu0 0
  %108 = vmatpush2.bf16.msra.mxu0 0
  %109 = vmatprep.mubr.bf16.mxu0 0
  %110 = vmatmul.mubr.bf16.gmra.mxu0 %v12
  %v111 = vpop.f32.mrf.mxu0
  %v112 = vadd.f32 0.0, %v111
  %v113 = vpop.f32.mrf.mxu0
  %v114 = vpop.f32.mrf.mxu0
  %v115 = vpop.f32.mrf.mxu0
  %116 = vdwg.mxu0
  %117 = vst [vmem:[%s2] sm:$0x3f] %v112
  // Predicated region
  $region10: #{discriminator_forward.9} parent=0 // pred_check
    _
  $region11: #{discriminator_forward.9} parent=0 // pred_check_branch
    %119 = sbr.rel (0) target = $region13
  $region12: #{discriminator_forward.9} parent=0 // pred_region
    _
  $region13: #{discriminator_forward.9} parent=0 // pred_fallthru
    _
  // Predicated region
  $region14: #{discriminator_forward.9} parent=0 // pred_check
    _
  $region15: #{discriminator_forward.9} parent=0 // pred_check_branch
    %121 = sbr.rel (0) target = $region17
  $region16: #{discriminator_forward.9} parent=0 // pred_region
    _
  $region17: #{discriminator_forward.9} parent=0 // pred_fallthru
    _

// kernel: discriminator_forward.7
$region0: #{discriminator_forward.7}
  #allocation0 [shape = 'u32[]', space=smem, size = 0x4, offset = 0x4, fixed_abs, tag = 'smem constant byte address 0x4 - core index']
  #allocation1 [shape = 'u32[144,128]{1,0:T(1,128)}', space=vmem, size = 0x12000, scoped, tag = 'internal scratch']
  %s0 = inlined_call_operand.vmem [shape: bf16[32,256], index: 0, kind: input, shape index: {}]
  %s1 = inlined_call_operand.vmem [shape: bf16[256,128], index: 1, kind: input, shape index: {}]
  %s2 = inlined_call_operand.vmem [shape: f32[32,1], index: 2, kind: input, shape index: {}]
  %s3 = inlined_call_operand.vmem [shape: f32[32,128], index: 3, kind: output, shape index: {}]
  %s4 = sld [smem:[#allocation0]]
  $region22: #{discriminator_forward.7} parent=0
    _
  %s6 = ssub.s32 1, %s4
  %s7 = scalar_select 0, %s6, %s4
  // Predicated region
  $region2: #{discriminator_forward.7} parent=0 // pred_check
    _
  $region3: #{discriminator_forward.7} parent=0 // pred_check_branch
    %9 = sbr.rel (0) target = $region5
  $region4: #{discriminator_forward.7} parent=0 // pred_region
    _
  $region5: #{discriminator_forward.7} parent=0 // pred_fallthru
    _
  // Predicated region
  $region6: #{discriminator_forward.7} parent=0 // pred_check
    _
  $region7: #{discriminator_forward.7} parent=0 // pred_check_branch
    %11 = sbr.rel (0) target = $region9
  $region8: #{discriminator_forward.7} parent=0 // pred_region
    _
  $region9: #{discriminator_forward.7} parent=0 // pred_fallthru
    _
  // Predicated region
  $region10: #{discriminator_forward.7} parent=0 // pred_check
    _
  $region11: #{discriminator_forward.7} parent=0 // pred_check_branch
    %13 = sbr.rel (0) target = $region13
  $region12: #{discriminator_forward.7} parent=0 // pred_region
    _
  $region13: #{discriminator_forward.7} parent=0 // pred_fallthru
    _
  %v15 = vld [vmem:[%s0] sm:$0xff]
  %v16 = vld [vmem:[%s0 + $0x8] sm:$0xff]
  %v17 = vld [vmem:[%s0 + $0x10] sm:$0xff]
  %v18 = vld [vmem:[%s0 + $0x18] sm:$0xff]
  %v19 = vld [vmem:[%s1] sm:$0xf]
  %v20 = vld [vmem:[%s1 + $0x4] sm:$0xf]
  %v21 = vld [vmem:[%s1 + $0x8] sm:$0xf]
  %v22 = vld [vmem:[%s1 + $0xc] sm:$0xf]
  %v23 = vld [vmem:[%s1 + $0x10] sm:$0xf]
  %v24 = vld [vmem:[%s1 + $0x14] sm:$0xf]
  %v25 = vld [vmem:[%s1 + $0x18] sm:$0xf]
  %v26 = vld [vmem:[%s1 + $0x1c] sm:$0xf]
  %v27 = vld [vmem:[%s1 + $0x20] sm:$0xf]
  %v28 = vld [vmem:[%s1 + $0x24] sm:$0xf]
  %v29 = vld [vmem:[%s1 + $0x28] sm:$0xf]
  %v30 = vld [vmem:[%s1 + $0x2c] sm:$0xf]
  %v31 = vld [vmem:[%s1 + $0x30] sm:$0xf]
  %v32 = vld [vmem:[%s1 + $0x34] sm:$0xf]
  %v33 = vld [vmem:[%s1 + $0x38] sm:$0xf]
  %v34 = vld [vmem:[%s1 + $0x3c] sm:$0xf]
  %v35 = vld [vmem:[%s1 + $0x40] sm:$0xf]
  %v36 = vld [vmem:[%s1 + $0x44] sm:$0xf]
  %v37 = vld [vmem:[%s1 + $0x48] sm:$0xf]
  %v38 = vld [vmem:[%s1 + $0x4c] sm:$0xf]
  %v39 = vld [vmem:[%s1 + $0x50] sm:$0xf]
  %v40 = vld [vmem:[%s1 + $0x54] sm:$0xf]
  %v41 = vld [vmem:[%s1 + $0x58] sm:$0xf]
  %v42 = vld [vmem:[%s1 + $0x5c] sm:$0xf]
  %v43 = vld [vmem:[%s1 + $0x60] sm:$0xf]
  %v44 = vld [vmem:[%s1 + $0x64] sm:$0xf]
  %v45 = vld [vmem:[%s1 + $0x68] sm:$0xf]
  %v46 = vld [vmem:[%s1 + $0x6c] sm:$0xf]
  %v47 = vld [vmem:[%s1 + $0x70] sm:$0xf]
  %v48 = vld [vmem:[%s1 + $0x74] sm:$0xf]
  %v49 = vld [vmem:[%s1 + $0x78] sm:$0xf]
  %v50 = vld [vmem:[%s1 + $0x7c] sm:$0xf]
  %v51 = vld [vmem:[%s2] sm:$0xff]
  %v52 = vld [vmem:[%s2 + $0x8] sm:$0xff]
  %v53 = vld [vmem:[%s2 + $0x10] sm:$0xff]
  %v54 = vld [vmem:[%s2 + $0x18] sm:$0xff]
  %56 = vset.pattern.permute.xlu0 0
  %57 = vperm.xlu0 %56, %v51
  %v58 = vpop.permute.xlu0 %57
  %61 = vset.pattern.permute.xlu0 0
  %62 = vperm.xlu0 %61, %v52
  %v63 = vpop.permute.xlu0 %62
  %66 = vset.pattern.permute.xlu0 0
  %67 = vperm.xlu0 %66, %v53
  %v68 = vpop.permute.xlu0 %67
  %71 = vset.pattern.permute.xlu0 0
  %72 = vperm.xlu0 %71, %v54
  %v73 = vpop.permute.xlu0 %72
  %v79 = vunpack.c.l.b16 %v15
  %v80 = vunpack.c.h.b16 %v15
  %v81 = vunpack.c.l.b16 %v16
  %v82 = vunpack.c.h.b16 %v16
  %v83 = vunpack.c.l.b16 %v17
  %v84 = vunpack.c.h.b16 %v17
  %v85 = vunpack.c.l.b16 %v18
  %v86 = vunpack.c.h.b16 %v18
  %v87 = vpack.c.b16 %v81, %v79
  %v88 = vpack.c.b16 %v82, %v80
  %v89 = vpack.c.b16 %v85, %v83
  %v90 = vpack.c.b16 %v86, %v84
  %v127 = vunpack.c.l.b16 %v19
  %v128 = vunpack.c.l.b16 %v20
  %v129 = vunpack.c.l.b16 %v21
  %v130 = vunpack.c.l.b16 %v22
  %v131 = vunpack.c.l.b16 %v23
  %v132 = vunpack.c.l.b16 %v24
  %v133 = vunpack.c.l.b16 %v25
  %v134 = vunpack.c.l.b16 %v26
  %v135 = vunpack.c.l.b16 %v27
  %v136 = vunpack.c.l.b16 %v28
  %v137 = vunpack.c.l.b16 %v29
  %v138 = vunpack.c.l.b16 %v30
  %v139 = vunpack.c.l.b16 %v31
  %v140 = vunpack.c.l.b16 %v32
  %v141 = vunpack.c.l.b16 %v33
  %v142 = vunpack.c.l.b16 %v34
  %v143 = vunpack.c.l.b16 %v35
  %v144 = vunpack.c.l.b16 %v36
  %v145 = vunpack.c.l.b16 %v37
  %v146 = vunpack.c.l.b16 %v38
  %v147 = vunpack.c.l.b16 %v39
  %v148 = vunpack.c.l.b16 %v40
  %v149 = vunpack.c.l.b16 %v41
  %v150 = vunpack.c.l.b16 %v42
  %v151 = vunpack.c.l.b16 %v43
  %v152 = vunpack.c.l.b16 %v44
  %v153 = vunpack.c.l.b16 %v45
  %v154 = vunpack.c.l.b16 %v46
  %v155 = vunpack.c.l.b16 %v47
  %v156 = vunpack.c.l.b16 %v48
  %v157 = vunpack.c.l.b16 %v49
  %v158 = vunpack.c.l.b16 %v50
  %v159 = vpack.c.b16 %v128, %v127
  %v160 = vpack.c.b16 %v130, %v129
  %v161 = vpack.c.b16 %v132, %v131
  %v162 = vpack.c.b16 %v134, %v133
  %v163 = vpack.c.b16 %v136, %v135
  %v164 = vpack.c.b16 %v138, %v137
  %v165 = vpack.c.b16 %v140, %v139
  %v166 = vpack.c.b16 %v142, %v141
  %v167 = vpack.c.b16 %v144, %v143
  %v168 = vpack.c.b16 %v146, %v145
  %v169 = vpack.c.b16 %v148, %v147
  %v170 = vpack.c.b16 %v150, %v149
  %v171 = vpack.c.b16 %v152, %v151
  %v172 = vpack.c.b16 %v154, %v153
  %v173 = vpack.c.b16 %v156, %v155
  %v174 = vpack.c.b16 %v158, %v157
  %191 = vmatprep.subr.bf16.mxu0 0
  %192 = vmatpush1.bf16.msra.mxu0 %v166
  %193 = vmatprep.subr.bf16.mxu0 0
  %194 = vmatpush1.bf16.msra.mxu0 %v165
  %195 = vmatprep.subr.bf16.mxu0 0
  %196 = vmatpush1.bf16.msra.mxu0 %v164
  %197 = vmatprep.subr.bf16.mxu0 0
  %198 = vmatpush1.bf16.msra.mxu0 %v163
  %199 = vmatprep.subr.bf16.mxu0 0
  %200 = vmatpush1.bf16.msra.mxu0 %v162
  %201 = vmatprep.subr.bf16.mxu0 0
  %202 = vmatpush1.bf16.msra.mxu0 %v161
  %203 = vmatprep.subr.bf16.mxu0 0
  %204 = vmatpush1.bf16.msra.mxu0 %v160
  %205 = vmatprep.subr.bf16.mxu0 0
  %206 = vmatpush1.bf16.msra.mxu0 %v159
  %207 = vmatprep.subr.bf16.mxu0 0
  %208 = vmatpush2.bf16.msra.mxu0 %v174
  %209 = vmatprep.subr.bf16.mxu0 0
  %210 = vmatpush2.bf16.msra.mxu0 %v173
  %211 = vmatprep.subr.bf16.mxu0 0
  %212 = vmatpush2.bf16.msra.mxu0 %v172
  %213 = vmatprep.subr.bf16.mxu0 0
  %214 = vmatpush2.bf16.msra.mxu0 %v171
  %215 = vmatprep.subr.bf16.mxu0 0
  %216 = vmatpush2.bf16.msra.mxu0 %v170
  %217 = vmatprep.subr.bf16.mxu0 0
  %218 = vmatpush2.bf16.msra.mxu0 %v169
  %219 = vmatprep.subr.bf16.mxu0 0
  %220 = vmatpush2.bf16.msra.mxu0 %v168
  %221 = vmatprep.subr.bf16.mxu0 0
  %222 = vmatpush2.bf16.msra.mxu0 %v167
  %223 = vmatprep.mubr.bf16.mxu0 %v88
  %224 = vmatmul.mubr.bf16.gmra.mxu0 %v87
  %v225 = vpop.f32.mrf.mxu0
  %v226 = vadd.f32 %v58, %v225
  %v227 = vpop.f32.mrf.mxu0
  %v228 = vpop.f32.mrf.mxu0
  %v229 = vadd.f32 %v63, %v228
  %v230 = vpop.f32.mrf.mxu0
  %231 = vmatprep.mubr.bf16.mxu0 %v90
  %232 = vmatmul.mubr.bf16.gmra.mxu0 %v89
  %v233 = vpop.f32.mrf.mxu0
  %v234 = vadd.f32 %v68, %v233
  %v235 = vpop.f32.mrf.mxu0
  %v236 = vpop.f32.mrf.mxu0
  %v237 = vadd.f32 %v73, %v236
  %v238 = vpop.f32.mrf.mxu0
  %239 = vdwg.mxu0
  %vm240 = vcmp.gt.f32.partialorder %v226, 0.0
  %vm241 = vcmp.gt.f32.partialorder %v229, 0.0
  %vm242 = vcmp.gt.f32.partialorder %v234, 0.0
  %vm243 = vcmp.gt.f32.partialorder %v237, 0.0
  %v244 = vmul.f32 %v226, 0.01
  %v245 = vmul.f32 %v229, 0.01
  %v246 = vmul.f32 %v234, 0.01
  %v247 = vmul.f32 %v237, 0.01
  %v248 = vsel %vm240, %v226, %v244
  %v249 = vsel %vm241, %v229, %v245
  %v250 = vsel %vm242, %v234, %v246
  %v251 = vsel %vm243, %v237, %v247
  %252 = vst [vmem:[%s3] sm:$0xff] %v248
  %253 = vst [vmem:[%s3 + $0x8] sm:$0xff] %v249
  %254 = vst [vmem:[%s3 + $0x10] sm:$0xff] %v250
  %255 = vst [vmem:[%s3 + $0x18] sm:$0xff] %v251
  // Predicated region
  $region14: #{discriminator_forward.7} parent=0 // pred_check
    _
  $region15: #{discriminator_forward.7} parent=0 // pred_check_branch
    %257 = sbr.rel (0) target = $region17
  $region16: #{discriminator_forward.7} parent=0 // pred_region
    _
  $region17: #{discriminator_forward.7} parent=0 // pred_fallthru
    _
  // Predicated region
  $region18: #{discriminator_forward.7} parent=0 // pred_check
    _
  $region19: #{discriminator_forward.7} parent=0 // pred_check_branch
    %259 = sbr.rel (0) target = $region21
  $region20: #{discriminator_forward.7} parent=0 // pred_region
    _
  $region21: #{discriminator_forward.7} parent=0 // pred_fallthru
    _

// kernel: discriminator_forward.8
$region0: #{discriminator_forward.8}
  #allocation0 [shape = 'u32[]', space=smem, size = 0x4, offset = 0x4, fixed_abs, tag = 'smem constant byte address 0x4 - core index']
  #allocation1 [shape = 'u32[144,128]{1,0:T(1,128)}', space=vmem, size = 0x12000, scoped, tag = 'internal scratch']
  %s0 = inlined_call_operand.vmem [shape: bf16[1,288], index: 0, kind: input, shape index: {}]
  %s1 = inlined_call_operand.vmem [shape: bf16[288,128], index: 1, kind: input, shape index: {}]
  %s2 = inlined_call_operand.vmem [shape: f32[1,128], index: 2, kind: output, shape index: {}]
  %s3 = sld [smem:[#allocation0]]
  $region18: #{discriminator_forward.8} parent=0
    _
  %s5 = ssub.s32 1, %s3
  %s6 = scalar_select 0, %s5, %s3
  // Predicated region
  $region2: #{discriminator_forward.8} parent=0 // pred_check
    _
  $region3: #{discriminator_forward.8} parent=0 // pred_check_branch
    %8 = sbr.rel (0) target = $region5
  $region4: #{discriminator_forward.8} parent=0 // pred_region
    _
  $region5: #{discriminator_forward.8} parent=0 // pred_fallthru
    _
  // Predicated region
  $region6: #{discriminator_forward.8} parent=0 // pred_check
    _
  $region7: #{discriminator_forward.8} parent=0 // pred_check_branch
    %10 = sbr.rel (0) target = $region9
  $region8: #{discriminator_forward.8} parent=0 // pred_region
    _
  $region9: #{discriminator_forward.8} parent=0 // pred_fallthru
    _
  %v12 = vld [vmem:[%s0] sm:$0x7]
  %v13 = vld [vmem:[%s1] sm:$0xf]
  %v14 = vld [vmem:[%s1 + $0x4] sm:$0xf]
  %v15 = vld [vmem:[%s1 + $0x8] sm:$0xf]
  %v16 = vld [vmem:[%s1 + $0xc] sm:$0xf]
  %v17 = vld [vmem:[%s1 + $0x10] sm:$0xf]
  %v18 = vld [vmem:[%s1 + $0x14] sm:$0xf]
  %v19 = vld [vmem:[%s1 + $0x18] sm:$0xf]
  %v20 = vld [vmem:[%s1 + $0x1c] sm:$0xf]
  %v21 = vld [vmem:[%s1 + $0x20] sm:$0xf]
  %v22 = vld [vmem:[%s1 + $0x24] sm:$0xf]
  %v23 = vld [vmem:[%s1 + $0x28] sm:$0xf]
  %v24 = vld [vmem:[%s1 + $0x2c] sm:$0xf]
  %v25 = vld [vmem:[%s1 + $0x30] sm:$0xf]
  %v26 = vld [vmem:[%s1 + $0x34] sm:$0xf]
  %v27 = vld [vmem:[%s1 + $0x38] sm:$0xf]
  %v28 = vld [vmem:[%s1 + $0x3c] sm:$0xf]
  %v29 = vld [vmem:[%s1 + $0x40] sm:$0xf]
  %v30 = vld [vmem:[%s1 + $0x44] sm:$0xf]
  %v31 = vld [vmem:[%s1 + $0x48] sm:$0xf]
  %v32 = vld [vmem:[%s1 + $0x4c] sm:$0xf]
  %v33 = vld [vmem:[%s1 + $0x50] sm:$0xf]
  %v34 = vld [vmem:[%s1 + $0x54] sm:$0xf]
  %v35 = vld [vmem:[%s1 + $0x58] sm:$0xf]
  %v36 = vld [vmem:[%s1 + $0x5c] sm:$0xf]
  %v37 = vld [vmem:[%s1 + $0x60] sm:$0xf]
  %v38 = vld [vmem:[%s1 + $0x64] sm:$0xf]
  %v39 = vld [vmem:[%s1 + $0x68] sm:$0xf]
  %v40 = vld [vmem:[%s1 + $0x6c] sm:$0xf]
  %v41 = vld [vmem:[%s1 + $0x70] sm:$0xf]
  %v42 = vld [vmem:[%s1 + $0x74] sm:$0xf]
  %v43 = vld [vmem:[%s1 + $0x78] sm:$0xf]
  %v44 = vld [vmem:[%s1 + $0x7c] sm:$0xf]
  %v45 = vld [vmem:[%s1 + $0x80] sm:$0xf]
  %v46 = vld [vmem:[%s1 + $0x84] sm:$0xf]
  %v47 = vld [vmem:[%s1 + $0x88] sm:$0xf]
  %v48 = vld [vmem:[%s1 + $0x8c] sm:$0xf]
  %v51 = vunpack.c.l.s4 1966171168
  %v52 = vunpack.c.0.s8 %v51
  %v53 = vlaneseq
  %v54 = vshrl.u32 %v53, 7
  %v55 = vsub.s32 %v52, %v54
  %v56 = vrot.slane %v12, %v55
  %v57 = vcombine.high %v56, %v56
  %v59 = vunpack.c.l.s4 1966171168
  %v60 = vunpack.c.0.s8 %v59
  %v61 = vlaneseq
  %v62 = vshrl.u32 %v61, 7
  %v63 = vsub.s32 %v60, %v62
  %v64 = vrot.slane %v56, %v63
  %v66 = vunpack.c.l.s4 1966171168
  %v67 = vunpack.c.0.s8 %v66
  %v68 = vlaneseq
  %v69 = vshrl.u32 %v68, 7
  %v70 = vsub.s32 %v67, %v69
  %v71 = vrot.slane %v57, %v70
  %v72 = vcombine.high %v64, %v64
  %v111 = vunpack.c.l.b16 %v13
  %v112 = vunpack.c.l.b16 %v14
  %v113 = vunpack.c.l.b16 %v15
  %v114 = vunpack.c.l.b16 %v16
  %v115 = vunpack.c.l.b16 %v17
  %v116 = vunpack.c.l.b16 %v18
  %v117 = vunpack.c.l.b16 %v19
  %v118 = vunpack.c.l.b16 %v20
  %v119 = vunpack.c.l.b16 %v21
  %v120 = vunpack.c.l.b16 %v22
  %v121 = vunpack.c.l.b16 %v23
  %v122 = vunpack.c.l.b16 %v24
  %v123 = vunpack.c.l.b16 %v25
  %v124 = vunpack.c.l.b16 %v26
  %v125 = vunpack.c.l.b16 %v27
  %v126 = vunpack.c.l.b16 %v28
  %v127 = vunpack.c.l.b16 %v29
  %v128 = vunpack.c.l.b16 %v30
  %v129 = vunpack.c.l.b16 %v31
  %v130 = vunpack.c.l.b16 %v32
  %v131 = vunpack.c.l.b16 %v33
  %v132 = vunpack.c.l.b16 %v34
  %v133 = vunpack.c.l.b16 %v35
  %v134 = vunpack.c.l.b16 %v36
  %v135 = vunpack.c.l.b16 %v37
  %v136 = vunpack.c.l.b16 %v38
  %v137 = vunpack.c.l.b16 %v39
  %v138 = vunpack.c.l.b16 %v40
  %v139 = vunpack.c.l.b16 %v41
  %v140 = vunpack.c.l.b16 %v42
  %v141 = vunpack.c.l.b16 %v43
  %v142 = vunpack.c.l.b16 %v44
  %v143 = vunpack.c.l.b16 %v45
  %v144 = vunpack.c.l.b16 %v46
  %v145 = vunpack.c.l.b16 %v47
  %v146 = vunpack.c.l.b16 %v48
  %v147 = vpack.c.b16 %v112, %v111
  %v148 = vpack.c.b16 %v114, %v113
  %v149 = vpack.c.b16 %v116, %v115
  %v150 = vpack.c.b16 %v118, %v117
  %v151 = vpack.c.b16 %v120, %v119
  %v152 = vpack.c.b16 %v122, %v121
  %v153 = vpack.c.b16 %v124, %v123
  %v154 = vpack.c.b16 %v126, %v125
  %v155 = vpack.c.b16 %v128, %v127
  %v156 = vpack.c.b16 %v130, %v129
  %v157 = vpack.c.b16 %v132, %v131
  %v158 = vpack.c.b16 %v134, %v133
  %v159 = vpack.c.b16 %v136, %v135
  %v160 = vpack.c.b16 %v138, %v137
  %v161 = vpack.c.b16 %v140, %v139
  %v162 = vpack.c.b16 %v142, %v141
  %v163 = vpack.c.b16 %v144, %v143
  %v164 = vpack.c.b16 %v146, %v145
  %vm183 = vcmask 261120
  %v185 = vsel %vm183, %v72, 0
  %187 = vmatprep.subr.bf16.mxu0 0
  %188 = vmatpush1.bf16.msra.mxu0 %v154
  %189 = vmatprep.subr.bf16.mxu0 0
  %190 = vmatpush1.bf16.msra.mxu0 %v153
  %191 = vmatprep.subr.bf16.mxu0 0
  %192 = vmatpush1.bf16.msra.mxu0 %v152
  %193 = vmatprep.subr.bf16.mxu0 0
  %194 = vmatpush1.bf16.msra.mxu0 %v151
  %195 = vmatprep.subr.bf16.mxu0 0
  %196 = vmatpush1.bf16.msra.mxu0 %v150
  %197 = vmatprep.subr.bf16.mxu0 0
  %198 = vmatpush1.bf16.msra.mxu0 %v149
  %199 = vmatprep.subr.bf16.mxu0 0
  %200 = vmatpush1.bf16.msra.mxu0 %v148
  %201 = vmatprep.subr.bf16.mxu0 0
  %202 = vmatpush1.bf16.msra.mxu0 %v147
  %203 = vmatprep.subr.bf16.mxu0 0
  %204 = vmatpush2.bf16.msra.mxu0 %v162
  %205 = vmatprep.subr.bf16.mxu0 0
  %206 = vmatpush2.bf16.msra.mxu0 %v161
  %207 = vmatprep.subr.bf16.mxu0 0
  %208 = vmatpush2.bf16.msra.mxu0 %v160
  %209 = vmatprep.subr.bf16.mxu0 0
  %210 = vmatpush2.bf16.msra.mxu0 %v159
  %211 = vmatprep.subr.bf16.mxu0 0
  %212 = vmatpush2.bf16.msra.mxu0 %v158
  %213 = vmatprep.subr.bf16.mxu0 0
  %214 = vmatpush2.bf16.msra.mxu0 %v157
  %215 = vmatprep.subr.bf16.mxu0 0
  %216 = vmatpush2.bf16.msra.mxu0 %v156
  %217 = vmatprep.subr.bf16.mxu0 0
  %218 = vmatpush2.bf16.msra.mxu0 %v155
  %219 = vmatprep.mubr.bf16.mxu0 %v71
  %220 = vmatmul.mubr.bf16.gmra.mxu0 %v64
  %v221 = vpop.f32.mrf.mxu0
  %v222 = vadd.f32 0.0, %v221
  %v223 = vpop.f32.mrf.mxu0
  %v224 = vpop.f32.mrf.mxu0
  %v225 = vpop.f32.mrf.mxu0
  %226 = vdwg.mxu0
  %227 = vmatprep.subr.bf16.mxu0 0
  %228 = vmatpush1.bf16.msra.mxu0 0
  %229 = vmatprep.subr.bf16.mxu0 0
  %230 = vmatpush1.bf16.msra.mxu0 0
  %231 = vmatprep.subr.bf16.mxu0 0
  %232 = vmatpush1.bf16.msra.mxu0 0
  %233 = vmatprep.subr.bf16.mxu0 0
  %234 = vmatpush1.bf16.msra.mxu0 0
  %235 = vmatprep.subr.bf16.mxu0 0
  %236 = vmatpush1.bf16.msra.mxu0 0
  %237 = vmatprep.subr.bf16.mxu0 0
  %238 = vmatpush1.bf16.msra.mxu0 0
  %239 = vmatprep.subr.bf16.mxu0 0
  %240 = vmatpush1.bf16.msra.mxu0 %v164
  %241 = vmatprep.subr.bf16.mxu0 0
  %242 = vmatpush1.bf16.msra.mxu0 %v163
  %243 = vmatprep.subr.bf16.mxu0 0
  %244 = vmatpush2.bf16.msra.mxu0 0
  %245 = vmatprep.subr.bf16.mxu0 0
  %246 = vmatpush2.bf16.msra.mxu0 0
  %247 = vmatprep.subr.bf16.mxu0 0
  %248 = vmatpush2.bf16.msra.mxu0 0
  %249 = vmatprep.subr.bf16.mxu0 0
  %250 = vmatpush2.bf16.msra.mxu0 0
  %251 = vmatprep.subr.bf16.mxu0 0
  %252 = vmatpush2.bf16.msra.mxu0 0
  %253 = vmatprep.subr.bf16.mxu0 0
  %254 = vmatpush2.bf16.msra.mxu0 0
  %255 = vmatprep.subr.bf16.mxu0 0
  %256 = vmatpush2.bf16.msra.mxu0 0
  %257 = vmatprep.subr.bf16.mxu0 0
  %258 = vmatpush2.bf16.msra.mxu0 0
  %259 = vmatprep.mubr.bf16.mxu0 0
  %260 = vmatmul.mubr.bf16.gmra.mxu0 %v185
  %v261 = vpop.f32.mrf.mxu0
  %v262 = vadd.f32 %v222, %v261
  %v263 = vpop.f32.mrf.mxu0
  %v264 = vpop.f32.mrf.mxu0
  %v265 = vpop.f32.mrf.mxu0
  %266 = vdwg.mxu0
  %267 = vst [vmem:[%s2] sm:$0x1] %v262
  // Predicated region
  $region10: #{discriminator_forward.8} parent=0 // pred_check
    _
  $region11: #{discriminator_forward.8} parent=0 // pred_check_branch
    %269 = sbr.rel (0) target = $region13
  $region12: #{discriminator_forward.8} parent=0 // pred_region
    _
  $region13: #{discriminator_forward.8} parent=0 // pred_fallthru
    _
  // Predicated region
  $region14: #{discriminator_forward.8} parent=0 // pred_check
    _
  $region15: #{discriminator_forward.8} parent=0 // pred_check_branch
    %271 = sbr.rel (0) target = $region17
  $region16: #{discriminator_forward.8} parent=0 // pred_region
    _
  $region17: #{discriminator_forward.8} parent=0 // pred_fallthru
    _

</llo_original>
